<compile_context>
chip_gen: v5e
topology: v5e:2x2
jax: 0.10.0
libtpu: 0.0.40
codegen_flags: <defaults>
</compile_context>

<pallas_src>
import functools

import jax
import jax.numpy as jnp
from jax.experimental import pallas as pl
from jax.experimental.pallas import tpu as pltpu

LANE = 128
SUBLANE = 8


def _round_up(v, m):
    return -(-v // m) * m


def fourier_kernel(x_ref, w_ref, o_ref, *, num_terms, feat_dtype):
    # x_ref: (C_in_pad, TILE_S), w_ref: (C_out, 2*C_in_pad*T), o_ref: (C_out, TILE_S)
    x = x_ref[...].astype(jnp.float32)      # recurrence/trig always in f32
    c1 = jnp.cos(x)                          # only 2 transcendentals / element
    s1 = jnp.sin(x)
    two_c1 = 2.0 * c1

    cos_rows = [c1]
    sin_rows = [s1]
    c_prev, s_prev = 1.0, 0.0                # cos(0*x), sin(0*x)
    c_cur, s_cur = c1, s1
    # Chebyshev 3-term recurrence (VPU only):
    #   cos((t+1)x) = 2*cos(x)*cos(tx) - cos((t-1)x)
    #   sin((t+1)x) = 2*cos(x)*sin(tx) - sin((t-1)x)
    for _ in range(1, num_terms):
        c_next = two_c1 * c_cur - c_prev
        s_next = two_c1 * s_cur - s_prev
        cos_rows.append(c_next)
        sin_rows.append(s_next)
        c_prev, s_prev = c_cur, s_cur
        c_cur, s_cur = c_next, s_next

    # Every slab is (C_in_pad, TILE_S) with C_in_pad % 8 == 0, so this concat is
    # plain sublane-aligned placement (no masked cross-sublane packing).
    feats = jnp.concatenate(cos_rows + sin_rows, axis=0).astype(feat_dtype)

    o_ref[...] = jnp.dot(w_ref[...], feats,
                         preferred_element_type=jnp.float32).astype(o_ref.dtype)


def fourier_transform(x, cos_weight, sin_weight, num_terms, *,
                      use_bf16_mxu=True, max_tile_s=32768):
    """x: [N, C_in, *spatial]; weights: [C_out, C_in*num_terms] (torch layout)."""
    N, c_in, *spatial = x.shape
    S = 1
    for d in spatial:
        S *= d
    c_out = cos_weight.shape[0]
    T = num_terms
    c_in_pad = _round_up(c_in, SUBLANE)
    feat_dtype = jnp.bfloat16 if use_bf16_mxu else jnp.float32

    # Fuse + column-permute + channel-pad weights (host side, once).
    # Torch column index is c*T + t; kernel feature row index is t*C_in_pad + c,
    # cos block first then sin block. Padded channels get zero weight columns,
    # so the (cos(0)=1) rows of padded input channels contribute nothing.
    def permute_pad(w):
        w3 = w.reshape(c_out, c_in, T).transpose(0, 2, 1)          # (C_out, T, C_in)
        w3 = jnp.pad(w3, ((0, 0), (0, 0), (0, c_in_pad - c_in)))
        return w3.reshape(c_out, T * c_in_pad)

    w_fused = jnp.concatenate(
        [permute_pad(cos_weight), permute_pad(sin_weight)], axis=1
    ).astype(feat_dtype)                                           # (C_out, 2*T*C_in_pad)

    x_flat = x.reshape(N, c_in, S)
    if c_in_pad != c_in:
        x_flat = jnp.pad(x_flat, ((0, 0), (0, c_in_pad - c_in), (0, 0)))

    # --- VMEM-budget-driven, lane-dense spatial tiling ----------------------
    try:
        vmem_cap = int(getattr(pltpu.get_tpu_info(), "vmem_capacity_bytes"))
    except Exception:
        vmem_cap = 64 * 1024 * 1024          # conservative fallback (v7x per-TC)
    vmem_limit = (vmem_cap * 3) // 4          # headroom for compiler temporaries
    budget = vmem_limit // 2

    feat_bytes = jnp.dtype(feat_dtype).itemsize
    # per-lane bytes: double-buffered x + out tiles, feats matrix, and the live
    # f32 cos/sin rows of the recurrence; 1.5x fudge for compiler temporaries.
    bytes_per_lane = (2 * 4 * (c_in_pad + c_out)
                      + 2 * T * c_in_pad * (feat_bytes + 4))
    bytes_per_lane = (bytes_per_lane * 3) // 2 + 1

    s_lane = _round_up(S, LANE)
    max_tile_cap = max(LANE, (max_tile_s // LANE) * LANE)          # round DOWN to 128
    tile_s = max(LANE, (budget // bytes_per_lane) // LANE * LANE)
    tile_s = min(tile_s, max_tile_cap, s_lane)
    if N == 1 and s_lane > LANE:
        # v7x has 2 TensorCores: guarantee >= 2 grid steps for single-batch calls.
        half = _round_up(-(-s_lane // 2), LANE)
        tile_s = min(tile_s, half)

    s_pad = _round_up(S, tile_s)
    if s_pad != S:
        x_flat = jnp.pad(x_flat, ((0, 0), (0, 0), (0, s_pad - S)))

    grid = (N, s_pad // tile_s)

    out_flat = pl.pallas_call(
        functools.partial(fourier_kernel, num_terms=T, feat_dtype=feat_dtype),
        out_shape=jax.ShapeDtypeStruct((N, c_out, s_pad), x.dtype),
        grid=grid,
        in_specs=[
            pl.BlockSpec((pl.Squeezed(), c_in_pad, tile_s), lambda b, si: (b, 0, si)),
            pl.BlockSpec((c_out, 2 * c_in_pad * T), lambda b, si: (0, 0)),
        ],
        out_specs=pl.BlockSpec((pl.Squeezed(), c_out, tile_s),
                               lambda b, si: (b, 0, si)),
        compiler_params=pltpu.CompilerParams(
            dimension_semantics=("parallel", "parallel"),
            vmem_limit_bytes=int(vmem_limit)),
    )(x_flat, w_fused)

    if s_pad != S:
        out_flat = out_flat[:, :, :S]
    return out_flat.reshape(N, c_out, *spatial)


def fourier_transform_ref(x, cos_weight, sin_weight, num_terms):
    """Pure-JAX reference mirroring the PyTorch forward exactly."""
    N, c_in, *spatial = x.shape
    c_out = cos_weight.shape[0]
    x_flat = x.reshape(N, c_in, -1)
    n = jnp.arange(1, num_terms + 1, dtype=x.dtype).reshape(1, 1, 1, num_terms)
    nx = x_flat[..., None] * n                                      # (N, C_in, S, T)
    cos_terms = jnp.cos(nx).transpose(0, 1, 3, 2).reshape(N, c_in * num_terms, -1)
    sin_terms = jnp.sin(nx).transpose(0, 1, 3, 2).reshape(N, c_in * num_terms, -1)
    out = cos_weight @ cos_terms + sin_weight @ sin_terms           # (N, C_out, S)
    return out.reshape(N, c_out, *spatial)


if __name__ == "__main__":
    # Small shapes consistent with the module: batch=2, in_channels=4,
    # spatial 16x16, out_channels=8, num_terms=3.
    N, C_IN, H, W = 2, 4, 16, 16
    C_OUT, T = 8, 3

    key = jax.random.PRNGKey(0)
    kx, kc, ks = jax.random.split(key, 3)
    x = jax.random.normal(kx, (N, C_IN, H, W), dtype=jnp.float32)
    # The torch module initializes weights to zeros; use deterministic random
    # values here so the kernel output is non-trivial.
    cos_weight = jax.random.normal(kc, (C_OUT, C_IN * T), dtype=jnp.float32) * 0.1
    sin_weight = jax.random.normal(ks, (C_OUT, C_IN * T), dtype=jnp.float32) * 0.1

    ref = fourier_transform_ref(x, cos_weight, sin_weight, T)

    # Exact f32 MXU path: tight tolerance vs reference.
    out_f32 = jax.block_until_ready(
        fourier_transform(x, cos_weight, sin_weight, T, use_bf16_mxu=False))
    assert out_f32.shape == (N, C_OUT, H, W)
    assert jnp.allclose(out_f32, ref, atol=1e-4, rtol=1e-4), "f32 path mismatch"

    # Default bf16-MXU path (f32 accumulate): looser tolerance.
    out_bf16 = jax.block_until_ready(
        fourier_transform(x, cos_weight, sin_weight, T, use_bf16_mxu=True))
    assert out_bf16.shape == (N, C_OUT, H, W)
    assert jnp.allclose(out_bf16, ref, atol=5e-2, rtol=5e-2), "bf16 path mismatch"

    print("KERNEL_OK")
</pallas_src>

<mosaic_0001>
module attributes {stable_mosaic.version = 11 : i64} {
  func.func @fourier_kernel(%arg0: i32, %arg1: i32, %arg2: memref<1x8x256xf32, #tpu.memory_space<vmem>>, %arg3: memref<8x48xf32, #tpu.memory_space<vmem>>, %arg4: memref<1x8x256xf32, #tpu.memory_space<vmem>>) attributes {dimension_semantics = [#tpu.dimension_semantics<parallel>, #tpu.dimension_semantics<parallel>], iteration_bounds = array<i64: 2, 1>, scalar_prefetch = 0 : i64, scratch_operands = 0 : i64, tpu.core_type = #tpu.core_type<tc>, window_params = [{transform_indices = @transform_0, window_bounds = array<i64: 1, 8, 256>}, {pipeline_mode = #tpu.pipeline_mode<synchronous>, transform_indices = @transform_1, window_bounds = array<i64: 8, 48>}, {transform_indices = @transform_2, window_bounds = array<i64: 1, 8, 256>}]} {
    %c0 = arith.constant 0 : index
    %c0_0 = arith.constant 0 : index
    %c0_1 = arith.constant 0 : index
    %0 = vector.load %arg2[%c0, %c0_0, %c0_1] : memref<1x8x256xf32, #tpu.memory_space<vmem>>, vector<1x8x256xf32>
    %1 = vector.shape_cast %0 : vector<1x8x256xf32> to vector<8x256xf32>
    %2 = math.cos %1 : vector<8x256xf32>
    %3 = math.sin %1 : vector<8x256xf32>
    %cst = arith.constant 2.000000e+00 : f32
    %4 = vector.broadcast %cst : f32 to vector<8x256xf32>
    %5 = arith.mulf %4, %2 : vector<8x256xf32>
    %6 = arith.mulf %5, %2 : vector<8x256xf32>
    %cst_2 = arith.constant 1.000000e+00 : f32
    %7 = vector.broadcast %cst_2 : f32 to vector<8x256xf32>
    %8 = arith.subf %6, %7 : vector<8x256xf32>
    %9 = arith.mulf %5, %3 : vector<8x256xf32>
    %cst_3 = arith.constant 0.000000e+00 : f32
    %10 = vector.broadcast %cst_3 : f32 to vector<8x256xf32>
    %11 = arith.subf %9, %10 : vector<8x256xf32>
    %12 = arith.mulf %5, %8 : vector<8x256xf32>
    %13 = arith.subf %12, %2 : vector<8x256xf32>
    %14 = arith.mulf %5, %11 : vector<8x256xf32>
    %15 = arith.subf %14, %3 : vector<8x256xf32>
    %16 = tpu.concatenate %2, %8, %13, %3, %11, %15 in 0 : vector<8x256xf32>, vector<8x256xf32>, vector<8x256xf32>, vector<8x256xf32>, vector<8x256xf32>, vector<8x256xf32> -> vector<48x256xf32>
    %c0_4 = arith.constant 0 : index
    %c0_5 = arith.constant 0 : index
    %17 = vector.load %arg3[%c0_4, %c0_5] : memref<8x48xf32, #tpu.memory_space<vmem>>, vector<8x48xf32>
    %cst_6 = arith.constant dense<0.000000e+00> : vector<8x256xf32>
    %18 = tpu.matmul %17, %16, %cst_6 {dimension_numbers = #tpu.dot_dimension_numbers<[1], [0], [0], [1], [0, 0, 1, 1], [], []>} : vector<8x48xf32>, vector<48x256xf32>, vector<8x256xf32> -> vector<8x256xf32>
    %c0_7 = arith.constant 0 : index
    %c0_8 = arith.constant 0 : index
    %c0_9 = arith.constant 0 : index
    %19 = vector.load %arg4[%c0_7, %c0_8, %c0_9] : memref<1x8x256xf32, #tpu.memory_space<vmem>>, vector<1x8x256xf32>
    %20 = vector.shape_cast %19 : vector<1x8x256xf32> to vector<8x256xf32>
    %21 = vector.shape_cast %18 : vector<8x256xf32> to vector<1x8x256xf32>
    tpu.vector_store %arg4[%c0_7, %c0_8, %c0_9], %21 {strides = array<i32>} : memref<1x8x256xf32, #tpu.memory_space<vmem>>, vector<1x8x256xf32>,
    return
  }
  func.func @transform_0(%arg0: i32, %arg1: i32) -> (i32, i32, i32) {
    %c0_i32 = arith.constant 0 : i32
    %c0_i32_0 = arith.constant 0 : i32
    return %arg0, %c0_i32, %arg1 : i32, i32, i32
  }
  func.func @transform_1(%arg0: i32, %arg1: i32) -> (i32, i32) {
    %c0_i32 = arith.constant 0 : i32
    %c0_i32_0 = arith.constant 0 : i32
    %c0_i32_1 = arith.constant 0 : i32
    return %c0_i32, %c0_i32_0 : i32, i32
  }
  func.func @transform_2(%arg0: i32, %arg1: i32) -> (i32, i32, i32) {
    %c0_i32 = arith.constant 0 : i32
    %c0_i32_0 = arith.constant 0 : i32
    return %arg0, %c0_i32, %arg1 : i32, i32, i32
  }
}

</mosaic_0001>

<llo_original>
// kernel: tpu_custom_call.1
$region0: #{tpu_custom_call.1}
  #allocation0 [shape = 'u32[]', space=smem, size = 0x4, offset = 0x4, fixed_abs, tag = 'smem constant byte address 0x4 - core index']
  #allocation1 [shape = 'u32[72,128]{1,0:T(1,128)}', space=vmem, size = 0x9000, scoped, tag = 'internal scratch']
  %s0 = inlined_call_operand.hbm [shape: f32[2,8,256], index: 0, kind: input, shape index: {}]
  %s1 = inlined_call_operand.hbm [shape: f32[8,48], index: 1, kind: input, shape index: {}]
  %s2 = inlined_call_operand.hbm [shape: f32[2,8,256], index: 2, kind: output, shape index: {}]
  %s3 = sld [smem:[#allocation0]]
  $region49: #{tpu_custom_call.1} parent=0
    _
  %s5 = ssub.s32 1, %s3
  %s6 = scalar_select 0, %s5, %s3
  $region1: #{tpu_custom_call.1} parent=0
    #allocation2 [shape = 'u8[16384]{0}', space=vmem, size = 0x4000, scoped, tag = 'input window, operand 0']
    #allocation3 [shape = 's32[2]{0}', space=sflag, size = 0x8, scoped, tag = 'scoped memory for tpu_custom_call.1']
    #allocation4 [shape = 's32[2]{0}', space=sflag, size = 0x8, scoped, tag = 'scoped memory for tpu_custom_call.1']
    #allocation5 [shape = 'u8[4096]{0}', space=vmem, size = 0x1000, scoped, tag = 'input window, operand 1, single buffered']
    #allocation6 [shape = 's32[1]{0}', space=sflag, size = 0x4, scoped, tag = 'scoped memory for tpu_custom_call.1']
    #allocation7 [shape = 'u8[16384]{0}', space=vmem, size = 0x4000, scoped, tag = 'output window, operand 0']
    %7 = vsyncpa [#allocation3], 0
    %s8 = scalar_lea.sflag [#allocation3], 1
    %9 = vsyncpa %s8, 0
    %10 = vsyncpa [#allocation6], 0
    %11 = vsyncpa [#allocation4], 0
    %s12 = scalar_lea.sflag [#allocation4], 1
    %13 = vsyncpa %s12, 0
    loop: start=0, step=1, limit=4
    $region2: #{tpu_custom_call.1} parent=1 // loop_pre_header
      _
    $region3: #{tpu_custom_call.1} parent=1 // loop_header
      %s15 = sphi 0, %s19
      %p16 = scmp.ge.s32.totalorder %s15, 4
      %s22 = sphi 0, %s34
      %s23 = sphi 0, %s30
      %s24 = sphi 0, %s22
      %s25 = sphi 0, %s23
      %s26 = sphi 0, %s24
      %s27 = sphi 0, %s25
      %s39 = sphi 0, %s41
      %s42 = sphi 0, %s39
      %s43 = sphi 0, %s42
      %s59 = sphi 0, %s43
      %s63 = sphi 0, %s63
      %s65 = sphi 0, %s63
      %s66 = sphi 0, %s65
      %s80 = sphi 0, %s66
      %s88 = sphi 0, %s90
      %s91 = sphi 0, %s88
      %s92 = sphi 0, %s91
      %s108 = sphi 0, %s92
    $region4: #{tpu_custom_call.1} parent=1 // loop_header_branch
      %18 = sbr.rel (%p16) target = $region8
    $region5: #{tpu_custom_call.1} parent=1 // loop_body
      %s20 = ssub.s32 %s15, 1
      %s21 = ssub.s32 %s15, 2
      %s28 = sadd.s32 1, %s23
      %p29 = scmp.ge.s32.totalorder %s28, 1
      %s30 = scalar_select %p29, 0, %s28
      %s31 = sadd.s32 1, %s22
      %s32 = scalar_select %p29, %s31, %s22
      %p33 = scmp.ge.s32.totalorder %s32, 2
      %s34 = scalar_select %p33, 0, %s32
      %s35 = ssub.s32 %s22, %s34
      %s36 = ssub.s32 %s23, %s30
      %s37 = sor.u32 %s35, %s36
      %p38 = scmp.eq.s32.totalorder %s37, 0
      %s40 = sadd.s32 %s39, 1
      %s41 = scalar_select %p38, %s39, %s40
      %p44 = pneg %p38
      %p45 = scmp.eq.s32.totalorder %s15, 1
      %p46 = por %p44, %p45
      %p47 = scmp.ne.s32.totalorder %s39, %s42
      %p48 = scmp.eq.s32.totalorder %s15, 0
      %p49 = por %p47, %p48
      %p50 = scmp.ne.s32.totalorder %s39, %s42
      %p51 = scmp.eq.s32.totalorder %s20, 1
      %p52 = por %p50, %p51
      %p53 = scmp.ne.s32.totalorder %s42, %s43
      %p54 = scmp.eq.s32.totalorder %s20, 0
      %p55 = por %p53, %p54
      %p56 = scmp.ne.s32.totalorder %s42, %s43
      %p57 = scmp.eq.s32.totalorder %s21, 1
      %p58 = por %p56, %p57
      %p60 = scmp.ne.s32.totalorder %s43, %s59
      %p61 = scmp.eq.s32.totalorder %s21, 0
      %p62 = por %p60, %p61
      %s64 = sadd.s32 %s63, 1
      %p67 = scmp.eq.s32.totalorder %s15, 1
      %p68 = scmp.ne.s32.totalorder %s63, %s65
      %p69 = scmp.eq.s32.totalorder %s15, 0
      %p70 = por %p68, %p69
      %p71 = scmp.ne.s32.totalorder %s63, %s65
      %p72 = scmp.eq.s32.totalorder %s20, 1
      %p73 = por %p71, %p72
      %p74 = scmp.ne.s32.totalorder %s65, %s66
      %p75 = scmp.eq.s32.totalorder %s20, 0
      %p76 = por %p74, %p75
      %p77 = scmp.ne.s32.totalorder %s65, %s66
      %p78 = scmp.eq.s32.totalorder %s21, 1
      %p79 = por %p77, %p78
      %p81 = scmp.ne.s32.totalorder %s66, %s80
      %p82 = scmp.eq.s32.totalorder %s21, 0
      %p83 = por %p81, %p82
      %s84 = ssub.s32 %s22, %s34
      %s85 = ssub.s32 %s23, %s30
      %s86 = sor.u32 %s84, %s85
      %p87 = scmp.eq.s32.totalorder %s86, 0
      %s89 = sadd.s32 %s88, 1
      %s90 = scalar_select %p87, %s88, %s89
      %p93 = pneg %p87
      %p94 = scmp.eq.s32.totalorder %s15, 1
      %p95 = por %p93, %p94
      %p96 = scmp.ne.s32.totalorder %s88, %s91
      %p97 = scmp.eq.s32.totalorder %s15, 0
      %p98 = por %p96, %p97
      %p99 = scmp.ne.s32.totalorder %s88, %s91
      %p100 = scmp.eq.s32.totalorder %s20, 1
      %p101 = por %p99, %p100
      %p102 = scmp.ne.s32.totalorder %s91, %s92
      %p103 = scmp.eq.s32.totalorder %s20, 0
      %p104 = por %p102, %p103
      %p105 = scmp.ne.s32.totalorder %s91, %s92
      %p106 = scmp.eq.s32.totalorder %s21, 1
      %p107 = por %p105, %p106
      %p109 = scmp.ne.s32.totalorder %s92, %s108
      %p110 = scmp.eq.s32.totalorder %s21, 0
      %p111 = por %p109, %p110
      %p112 = scmp.le.s32.totalorder 1, %s15
      %p113 = scmp.lt.s32.totalorder %s15, 3
      %p114 = pnand %p112, %p113
      %p115 = pneg %p114
      // Predicated region
      $region9: #{tpu_custom_call.1} parent=5 // pred_check
        _
      $region10: #{tpu_custom_call.1} parent=5 // pred_check_branch
        %117 = sbr.rel (%p114) target = $region12
      $region11: #{tpu_custom_call.1} parent=5 // pred_region
        %s118 = ssub.s32 %s15, 1
        // Predicated region
        $region13: #{tpu_custom_call.1} parent=11 // pred_check
          %p119 = pneg %p76
        $region14: #{tpu_custom_call.1} parent=11 // pred_check_branch
          %121 = sbr.rel (%p119) target = $region16
        $region15: #{tpu_custom_call.1} parent=11 // pred_region
          %123 = vsyncadd [#allocation6], 0
          %s125 = sshll.u32 %s1, 4
          %s126 = int_to_ptr.hbm [resolvable:$true] %s125
          %s127 = sshll.u32 [#allocation5], 4
          %s128 = int_to_ptr.vmem [resolvable:$true] %s127
          %130 = dma.hbm_to_vmem [thread:$0]  %s126, 128, %s128, [#allocation6]
        $region16: #{tpu_custom_call.1} parent=11 // pred_fallthru
          _
      $region12: #{tpu_custom_call.1} parent=5 // pred_fallthru
        _
      %p131 = scmp.lt.s32.totalorder %s15, 2
      // Predicated region
      $region17: #{tpu_custom_call.1} parent=5 // pred_check
        %p132 = pneg %p131
      $region18: #{tpu_custom_call.1} parent=5 // pred_check_branch
        %134 = sbr.rel (%p132) target = $region20
      $region19: #{tpu_custom_call.1} parent=5 // pred_region
        // Predicated region
        $region21: #{tpu_custom_call.1} parent=19 // pred_check
          %p135 = pneg %p49
        $region22: #{tpu_custom_call.1} parent=19 // pred_check_branch
          %137 = sbr.rel (%p135) target = $region24
        $region23: #{tpu_custom_call.1} parent=19 // pred_region
          %s138 = sand.u32 %s39, 1
          %s139 = scalar_lea.sflag [#allocation3], %s138
          %s140 = sand.u32 %s39, 1
          %s141 = smul.addr %s140, 16
          %s142 = scalar_lea.vmem [#allocation2], %s141
          %s143 = smul.u32 2, %s23
          %145 = vsyncadd %s139, 0
          %s146 = smul.addr %s22, 2
          %s147 = sadd.s32 %s143, %s146
          %s148 = smul.addr %s147, 8
          %s149 = scalar_lea.hbm %s0, %s148
          %s151 = sshll.u32 %s149, 4
          %s152 = int_to_ptr.hbm [resolvable:$true] %s151
          %s153 = sshll.u32 %s142, 4
          %s154 = int_to_ptr.vmem [resolvable:$true] %s153
          %156 = dma.hbm_to_vmem [thread:$0]  %s152, 256, %s154, %s139
        $region24: #{tpu_custom_call.1} parent=19 // pred_fallthru
          _
      $region20: #{tpu_custom_call.1} parent=5 // pred_fallthru
        _
      %p157 = scmp.le.s32.totalorder 1, %s15
      %p158 = scmp.lt.s32.totalorder %s15, 3
      %p159 = pnand %p157, %p158
      %p160 = pneg %p159
      // Predicated region
      $region25: #{tpu_custom_call.1} parent=5 // pred_check
        _
      $region26: #{tpu_custom_call.1} parent=5 // pred_check_branch
        %162 = sbr.rel (%p159) target = $region28
      $region27: #{tpu_custom_call.1} parent=5 // pred_region
        %s163 = ssub.s32 %s15, 1
        %s164 = sand.u32 %s42, 1
        %s165 = scalar_lea.sflag [#allocation3], %s164
        %s166 = sand.u32 %s42, 1
        %s167 = smul.addr %s166, 16
        %s168 = scalar_lea.vmem [#allocation2], %s167
        // Predicated region
        $region29: #{tpu_custom_call.1} parent=27 // pred_check
          %p169 = pneg %p55
        $region30: #{tpu_custom_call.1} parent=27 // pred_check_branch
          %171 = sbr.rel (%p169) target = $region32
        $region31: #{tpu_custom_call.1} parent=27 // pred_region
          %173 = dma.done %s165, 256
        $region32: #{tpu_custom_call.1} parent=27 // pred_fallthru
          _
        // Predicated region
        $region33: #{tpu_custom_call.1} parent=27 // pred_check
          %p174 = pneg %p76
        $region34: #{tpu_custom_call.1} parent=27 // pred_check_branch
          %176 = sbr.rel (%p174) target = $region36
        $region35: #{tpu_custom_call.1} parent=27 // pred_region
          %178 = dma.done [#allocation6], 128
        $region36: #{tpu_custom_call.1} parent=27 // pred_fallthru
          _
        %s179 = sand.u32 %s42, 1
        %s180 = scalar_lea.sflag [#allocation3], %s179
        %s181 = sand.u32 %s42, 1
        %s182 = smul.addr %s181, 16
        %s183 = scalar_lea.vmem [#allocation2], %s182
        %p184 = pneg %p55
        %p185 = pneg %p52
        %p186 = pneg %p76
        %p187 = pneg %p73
        %p188 = pneg %p104
        %p189 = pneg %p101
        %s190 = sand.u32 %s91, 1
        %s191 = scalar_lea.sflag [#allocation4], %s190
        %s192 = sand.u32 %s91, 1
        %s193 = smul.addr %s192, 16
        %s194 = scalar_lea.vmem [#allocation7], %s193
        %s195 = smul.u32 2, %s25
        %s196 = smul.u32 2, %s25
        %v197 = vld [vmem:[%s168] sm:$0xff]
        %v198 = vld [vmem:[%s168 + $0x8] sm:$0xff]
        %v199 = vand.u32 2147483647, %v197
        %vm200 = vcmp.le.f32.partialorder %v199, 0.7853982
        %vm201 = vcmp.lt.s32.totalorder %v197, 0
        %v202 = vand.u32 %v197, 2139095040
        %v203 = vshrl.u32 %v202, 23
        %v204 = vsub.s32 %v203, 127
        %v205 = vand.u32 2147483647, %v197
        %v206 = vand.u32 %v205, 8388607
        %v207 = vor.u32 %v206, 8388608
        %v208 = vsub.s32 0, %v207
        %v209 = vadd.s32 %v204, 1
        %vm210 = vcmp.gt.s32.totalorder %v209, 0
        %v211 = vsel %vm210, %v209, 0
        %v212 = vshrl.u32 %v211, 5
        %v213 = vand.u32 %v211, 31
        %v214 = vsub.s32 32, %v213
        %v215 = vshrl.u32 683565275, %v214
        %v216 = vshll.u32 683565275, %v213
        %v217 = vshrl.u32 2475754826, %v214
        %v218 = vor.u32 %v216, %v217
        %v219 = vshll.u32 2475754826, %v213
        %v220 = vshrl.u32 2131351028, %v214
        %v221 = vor.u32 %v219, %v220
        %v222 = vshll.u32 2131351028, %v213
        %v223 = vshrl.u32 2102212464, %v214
        %v224 = vor.u32 %v222, %v223
        %v225 = vshll.u32 2102212464, %v213
        %v226 = vshrl.u32 920167782, %v214
        %v227 = vor.u32 %v225, %v226
        %v228 = vshll.u32 920167782, %v213
        %v229 = vshrl.u32 1326507024, %v214
        %v230 = vor.u32 %v228, %v229
        %vm231 = vcmp.lt.s32.totalorder %v212, 1
        %vm232 = vcmp.lt.s32.totalorder %v212, 2
        %vm233 = vcmp.lt.s32.totalorder %v212, 3
        %vm234 = vcmp.lt.s32.totalorder %v212, 4
        %v235 = vsel %vm231, %v215, %v218
        %v236 = vsel %vm234, %v224, 2102212464
        %v237 = vsel %vm233, %v221, %v236
        %v238 = vsel %vm232, %v235, %v237
        %v239 = vsel %vm231, %v218, %v221
        %v240 = vsel %vm234, %v227, 920167782
        %v241 = vsel %vm233, %v224, %v240
        %v242 = vsel %vm232, %v239, %v241
        %v243 = vsel %vm231, %v221, %v224
        %v244 = vsel %vm234, %v230, 1326507024
        %v245 = vsel %vm233, %v227, %v244
        %v246 = vsel %vm232, %v243, %v245
        %v247 = vshll.u32 %v207, 8
        %v248 = vand.u32 %v247, 65535
        %v249 = vshrl.u32 %v247, 16
        %v250 = vand.u32 %v246, 65535
        %v251 = vshrl.u32 %v246, 16
        %v252 = vmul.u32 %v248, %v250
        %v253 = vmul.u32 %v248, %v251
        %v254 = vmul.u32 %v249, %v250
        %v255 = vmul.u32 %v249, %v251
        %v256 = vshll.u32 %v253, 16
        %v257 = vshrl.u32 %v253, 16
        %v258 = vshll.u32 %v254, 16
        %v259 = vshrl.u32 %v254, 16
        %vm260 = vc.u32 %v252, %v256
        %v261 = vsel %vm260, 1, 0
        %v262 = vadd.s32 %v252, %v256
        %v263 = vadd.s32 %v255, %v261
        %vm264 = vc.u32 %v262, %v258
        %v265 = vsel %vm264, 1, 0
        %v266 = vadd.s32 %v262, %v258
        %v267 = vadd.s32 %v263, %v265
        %v268 = vadd.s32 %v267, %v257
        %v269 = vadd.s32 %v268, %v259
        %v270 = vand.u32 %v247, 65535
        %v271 = vshrl.u32 %v247, 16
        %v272 = vand.u32 %v242, 65535
        %v273 = vshrl.u32 %v242, 16
        %v274 = vmul.u32 %v270, %v272
        %v275 = vmul.u32 %v270, %v273
        %v276 = vmul.u32 %v271, %v272
        %v277 = vmul.u32 %v271, %v273
        %v278 = vshll.u32 %v275, 16
        %v279 = vshrl.u32 %v275, 16
        %v280 = vshll.u32 %v276, 16
        %v281 = vshrl.u32 %v276, 16
        %vm282 = vc.u32 %v274, %v278
        %v283 = vsel %vm282, 1, 0
        %v284 = vadd.s32 %v274, %v278
        %v285 = vadd.s32 %v277, %v283
        %vm286 = vc.u32 %v284, %v280
        %v287 = vsel %vm286, 1, 0
        %v288 = vadd.s32 %v284, %v280
        %v289 = vadd.s32 %v285, %v287
        %v290 = vadd.s32 %v289, %v279
        %v291 = vadd.s32 %v290, %v281
        %v292 = vmul.u32 %v247, %v238
        %v293 = vadd.s32 %v269, %v288
        %vm294 = vc.u32 %v269, %v288
        %v295 = vadd.s32 %v291, 1
        %v296 = vsel %vm294, %v295, %v291
        %v297 = vadd.s32 %v292, %v296
        %v298 = vadd.s32 %v297, 536870912
        %v299 = vshrl.u32 %v298, 30
        %v300 = vshll.u32 %v299, 30
        %v301 = vsub.s32 %v297, %v300
        %vm302 = vcmp.lt.s32.totalorder %v301, 0
        %v303 = vsub.s32 0, %v301
        %v304 = vsel %vm302, %v303, %v301
        %v305 = vclz %v304
        %v306 = vsub.s32 %v305, 2
        %vm307 = vcmp.gt.s32.totalorder 0, %v306
        %v308 = vsel %vm307, 0, %v306
        %v309 = vsub.s32 32, %v308
        %v310 = vshll.u32 %v301, %v308
        %v311 = vshrl.u32 %v293, %v309
        %v312 = vor.u32 %v310, %v311
        %v313 = vsub.s32 4294967266, %v308
        %v314 = vadd.s32 %v313, 127
        %v315 = vshll.u32 %v314, 23
        %v316 = vor.u32 4788187, %v315
        %v317 = vand.u32 2147483647, %v316
        %v319 = vcvt.s32.f32 %v312
        %v320 = vmul.f32 %v319, %v317
        %v321 = vxor.u32 %v320, 2147483648
        %v322 = vsel %vm201, %v321, %v320
        %v323 = vsub.s32 4, %v299
        %v324 = vsel %vm201, %v323, %v299
        %v325 = vsel %vm200, %v197, %v322
        %v326 = vsel %vm200, 0, %v324
        %v327 = vmul.f32 %v325, %v325
        %v328 = vmul.f32 %v327, -0.001358992
        %v329 = vadd.f32 %v328, 0.041655596
        %v330 = vmul.f32 %v327, %v329
        %v331 = vadd.f32 %v330, -0.4999988
        %v332 = vmul.f32 %v327, %v331
        %v333 = vadd.f32 1.0, %v332
        %v334 = vmul.f32 %v325, %v325
        %v335 = vmul.f32 %v334, -0.00019511016
        %v336 = vadd.f32 %v335, 0.008332121
        %v337 = vmul.f32 %v334, %v336
        %v338 = vadd.f32 %v337, -0.16666654
        %v339 = vmul.f32 %v334, %v338
        %v340 = vadd.f32 %v339, 1.0
        %v341 = vmul.f32 %v340, %v325
        %vm342 = vweird.f32 %v197
        %v343 = vand.u32 %v326, 3
        %vm344 = vcmp.lt.s32.totalorder %v343, 2
        %vm345 = vcmp.eq.s32.totalorder %v343, 0
        %v346 = vxor.u32 %v341, 2147483648
        %v347 = vsel %vm345, %v333, %v346
        %vm348 = vcmp.eq.s32.totalorder %v343, 2
        %v349 = vxor.u32 %v333, 2147483648
        %v350 = vsel %vm348, %v349, %v341
        %v351 = vsel %vm344, %v347, %v350
        %v352 = vsel %vm342, nan, %v351
        %v353 = vand.u32 2147483647, %v198
        %vm354 = vcmp.le.f32.partialorder %v353, 0.7853982
        %vm355 = vcmp.lt.s32.totalorder %v198, 0
        %v356 = vand.u32 %v198, 2139095040
        %v357 = vshrl.u32 %v356, 23
        %v358 = vsub.s32 %v357, 127
        %v359 = vand.u32 2147483647, %v198
        %v360 = vand.u32 %v359, 8388607
        %v361 = vor.u32 %v360, 8388608
        %v362 = vsub.s32 0, %v361
        %v363 = vadd.s32 %v358, 1
        %vm364 = vcmp.gt.s32.totalorder %v363, 0
        %v365 = vsel %vm364, %v363, 0
        %v366 = vshrl.u32 %v365, 5
        %v367 = vand.u32 %v365, 31
        %v368 = vsub.s32 32, %v367
        %v369 = vshrl.u32 683565275, %v368
        %v370 = vshll.u32 683565275, %v367
        %v371 = vshrl.u32 2475754826, %v368
        %v372 = vor.u32 %v370, %v371
        %v373 = vshll.u32 2475754826, %v367
        %v374 = vshrl.u32 2131351028, %v368
        %v375 = vor.u32 %v373, %v374
        %v376 = vshll.u32 2131351028, %v367
        %v377 = vshrl.u32 2102212464, %v368
        %v378 = vor.u32 %v376, %v377
        %v379 = vshll.u32 2102212464, %v367
        %v380 = vshrl.u32 920167782, %v368
        %v381 = vor.u32 %v379, %v380
        %v382 = vshll.u32 920167782, %v367
        %v383 = vshrl.u32 1326507024, %v368
        %v384 = vor.u32 %v382, %v383
        %vm385 = vcmp.lt.s32.totalorder %v366, 1
        %vm386 = vcmp.lt.s32.totalorder %v366, 2
        %vm387 = vcmp.lt.s32.totalorder %v366, 3
        %vm388 = vcmp.lt.s32.totalorder %v366, 4
        %v389 = vsel %vm385, %v369, %v372
        %v390 = vsel %vm388, %v378, 2102212464
        %v391 = vsel %vm387, %v375, %v390
        %v392 = vsel %vm386, %v389, %v391
        %v393 = vsel %vm385, %v372, %v375
        %v394 = vsel %vm388, %v381, 920167782
        %v395 = vsel %vm387, %v378, %v394
        %v396 = vsel %vm386, %v393, %v395
        %v397 = vsel %vm385, %v375, %v378
        %v398 = vsel %vm388, %v384, 1326507024
        %v399 = vsel %vm387, %v381, %v398
        %v400 = vsel %vm386, %v397, %v399
        %v401 = vshll.u32 %v361, 8
        %v402 = vand.u32 %v401, 65535
        %v403 = vshrl.u32 %v401, 16
        %v404 = vand.u32 %v400, 65535
        %v405 = vshrl.u32 %v400, 16
        %v406 = vmul.u32 %v402, %v404
        %v407 = vmul.u32 %v402, %v405
        %v408 = vmul.u32 %v403, %v404
        %v409 = vmul.u32 %v403, %v405
        %v410 = vshll.u32 %v407, 16
        %v411 = vshrl.u32 %v407, 16
        %v412 = vshll.u32 %v408, 16
        %v413 = vshrl.u32 %v408, 16
        %vm414 = vc.u32 %v406, %v410
        %v415 = vsel %vm414, 1, 0
        %v416 = vadd.s32 %v406, %v410
        %v417 = vadd.s32 %v409, %v415
        %vm418 = vc.u32 %v416, %v412
        %v419 = vsel %vm418, 1, 0
        %v420 = vadd.s32 %v416, %v412
        %v421 = vadd.s32 %v417, %v419
        %v422 = vadd.s32 %v421, %v411
        %v423 = vadd.s32 %v422, %v413
        %v424 = vand.u32 %v401, 65535
        %v425 = vshrl.u32 %v401, 16
        %v426 = vand.u32 %v396, 65535
        %v427 = vshrl.u32 %v396, 16
        %v428 = vmul.u32 %v424, %v426
        %v429 = vmul.u32 %v424, %v427
        %v430 = vmul.u32 %v425, %v426
        %v431 = vmul.u32 %v425, %v427
        %v432 = vshll.u32 %v429, 16
        %v433 = vshrl.u32 %v429, 16
        %v434 = vshll.u32 %v430, 16
        %v435 = vshrl.u32 %v430, 16
        %vm436 = vc.u32 %v428, %v432
        %v437 = vsel %vm436, 1, 0
        %v438 = vadd.s32 %v428, %v432
        %v439 = vadd.s32 %v431, %v437
        %vm440 = vc.u32 %v438, %v434
        %v441 = vsel %vm440, 1, 0
        %v442 = vadd.s32 %v438, %v434
        %v443 = vadd.s32 %v439, %v441
        %v444 = vadd.s32 %v443, %v433
        %v445 = vadd.s32 %v444, %v435
        %v446 = vmul.u32 %v401, %v392
        %v447 = vadd.s32 %v423, %v442
        %vm448 = vc.u32 %v423, %v442
        %v449 = vadd.s32 %v445, 1
        %v450 = vsel %vm448, %v449, %v445
        %v451 = vadd.s32 %v446, %v450
        %v452 = vadd.s32 %v451, 536870912
        %v453 = vshrl.u32 %v452, 30
        %v454 = vshll.u32 %v453, 30
        %v455 = vsub.s32 %v451, %v454
        %vm456 = vcmp.lt.s32.totalorder %v455, 0
        %v457 = vsub.s32 0, %v455
        %v458 = vsel %vm456, %v457, %v455
        %v459 = vclz %v458
        %v460 = vsub.s32 %v459, 2
        %vm461 = vcmp.gt.s32.totalorder 0, %v460
        %v462 = vsel %vm461, 0, %v460
        %v463 = vsub.s32 32, %v462
        %v464 = vshll.u32 %v455, %v462
        %v465 = vshrl.u32 %v447, %v463
        %v466 = vor.u32 %v464, %v465
        %v467 = vsub.s32 4294967266, %v462
        %v468 = vadd.s32 %v467, 127
        %v469 = vshll.u32 %v468, 23
        %v470 = vor.u32 4788187, %v469
        %v471 = vand.u32 2147483647, %v470
        %v473 = vcvt.s32.f32 %v466
        %v474 = vmul.f32 %v473, %v471
        %v475 = vxor.u32 %v474, 2147483648
        %v476 = vsel %vm355, %v475, %v474
        %v477 = vsub.s32 4, %v453
        %v478 = vsel %vm355, %v477, %v453
        %v479 = vsel %vm354, %v198, %v476
        %v480 = vsel %vm354, 0, %v478
        %v481 = vmul.f32 %v479, %v479
        %v482 = vmul.f32 %v481, -0.001358992
        %v483 = vadd.f32 %v482, 0.041655596
        %v484 = vmul.f32 %v481, %v483
        %v485 = vadd.f32 %v484, -0.4999988
        %v486 = vmul.f32 %v481, %v485
        %v487 = vadd.f32 1.0, %v486
        %v488 = vmul.f32 %v479, %v479
        %v489 = vmul.f32 %v488, -0.00019511016
        %v490 = vadd.f32 %v489, 0.008332121
        %v491 = vmul.f32 %v488, %v490
        %v492 = vadd.f32 %v491, -0.16666654
        %v493 = vmul.f32 %v488, %v492
        %v494 = vadd.f32 %v493, 1.0
        %v495 = vmul.f32 %v494, %v479
        %vm496 = vweird.f32 %v198
        %v497 = vand.u32 %v480, 3
        %vm498 = vcmp.lt.s32.totalorder %v497, 2
        %vm499 = vcmp.eq.s32.totalorder %v497, 0
        %v500 = vxor.u32 %v495, 2147483648
        %v501 = vsel %vm499, %v487, %v500
        %vm502 = vcmp.eq.s32.totalorder %v497, 2
        %v503 = vxor.u32 %v487, 2147483648
        %v504 = vsel %vm502, %v503, %v495
        %v505 = vsel %vm498, %v501, %v504
        %v506 = vsel %vm496, nan, %v505
        %v507 = vand.u32 2147483647, %v197
        %vm508 = vcmp.le.f32.partialorder %v507, 0.7853982
        %vm509 = vcmp.lt.s32.totalorder %v197, 0
        %v510 = vand.u32 %v197, 2139095040
        %v511 = vshrl.u32 %v510, 23
        %v512 = vsub.s32 %v511, 127
        %v513 = vand.u32 2147483647, %v197
        %v514 = vand.u32 %v513, 8388607
        %v515 = vor.u32 %v514, 8388608
        %v516 = vsub.s32 0, %v515
        %v517 = vadd.s32 %v512, 1
        %vm518 = vcmp.gt.s32.totalorder %v517, 0
        %v519 = vsel %vm518, %v517, 0
        %v520 = vshrl.u32 %v519, 5
        %v521 = vand.u32 %v519, 31
        %v522 = vsub.s32 32, %v521
        %v523 = vshrl.u32 683565275, %v522
        %v524 = vshll.u32 683565275, %v521
        %v525 = vshrl.u32 2475754826, %v522
        %v526 = vor.u32 %v524, %v525
        %v527 = vshll.u32 2475754826, %v521
        %v528 = vshrl.u32 2131351028, %v522
        %v529 = vor.u32 %v527, %v528
        %v530 = vshll.u32 2131351028, %v521
        %v531 = vshrl.u32 2102212464, %v522
        %v532 = vor.u32 %v530, %v531
        %v533 = vshll.u32 2102212464, %v521
        %v534 = vshrl.u32 920167782, %v522
        %v535 = vor.u32 %v533, %v534
        %v536 = vshll.u32 920167782, %v521
        %v537 = vshrl.u32 1326507024, %v522
        %v538 = vor.u32 %v536, %v537
        %vm539 = vcmp.lt.s32.totalorder %v520, 1
        %vm540 = vcmp.lt.s32.totalorder %v520, 2
        %vm541 = vcmp.lt.s32.totalorder %v520, 3
        %vm542 = vcmp.lt.s32.totalorder %v520, 4
        %v543 = vsel %vm539, %v523, %v526
        %v544 = vsel %vm542, %v532, 2102212464
        %v545 = vsel %vm541, %v529, %v544
        %v546 = vsel %vm540, %v543, %v545
        %v547 = vsel %vm539, %v526, %v529
        %v548 = vsel %vm542, %v535, 920167782
        %v549 = vsel %vm541, %v532, %v548
        %v550 = vsel %vm540, %v547, %v549
        %v551 = vsel %vm539, %v529, %v532
        %v552 = vsel %vm542, %v538, 1326507024
        %v553 = vsel %vm541, %v535, %v552
        %v554 = vsel %vm540, %v551, %v553
        %v555 = vshll.u32 %v515, 8
        %v556 = vand.u32 %v555, 65535
        %v557 = vshrl.u32 %v555, 16
        %v558 = vand.u32 %v554, 65535
        %v559 = vshrl.u32 %v554, 16
        %v560 = vmul.u32 %v556, %v558
        %v561 = vmul.u32 %v556, %v559
        %v562 = vmul.u32 %v557, %v558
        %v563 = vmul.u32 %v557, %v559
        %v564 = vshll.u32 %v561, 16
        %v565 = vshrl.u32 %v561, 16
        %v566 = vshll.u32 %v562, 16
        %v567 = vshrl.u32 %v562, 16
        %vm568 = vc.u32 %v560, %v564
        %v569 = vsel %vm568, 1, 0
        %v570 = vadd.s32 %v560, %v564
        %v571 = vadd.s32 %v563, %v569
        %vm572 = vc.u32 %v570, %v566
        %v573 = vsel %vm572, 1, 0
        %v574 = vadd.s32 %v570, %v566
        %v575 = vadd.s32 %v571, %v573
        %v576 = vadd.s32 %v575, %v565
        %v577 = vadd.s32 %v576, %v567
        %v578 = vand.u32 %v555, 65535
        %v579 = vshrl.u32 %v555, 16
        %v580 = vand.u32 %v550, 65535
        %v581 = vshrl.u32 %v550, 16
        %v582 = vmul.u32 %v578, %v580
        %v583 = vmul.u32 %v578, %v581
        %v584 = vmul.u32 %v579, %v580
        %v585 = vmul.u32 %v579, %v581
        %v586 = vshll.u32 %v583, 16
        %v587 = vshrl.u32 %v583, 16
        %v588 = vshll.u32 %v584, 16
        %v589 = vshrl.u32 %v584, 16
        %vm590 = vc.u32 %v582, %v586
        %v591 = vsel %vm590, 1, 0
        %v592 = vadd.s32 %v582, %v586
        %v593 = vadd.s32 %v585, %v591
        %vm594 = vc.u32 %v592, %v588
        %v595 = vsel %vm594, 1, 0
        %v596 = vadd.s32 %v592, %v588
        %v597 = vadd.s32 %v593, %v595
        %v598 = vadd.s32 %v597, %v587
        %v599 = vadd.s32 %v598, %v589
        %v600 = vmul.u32 %v555, %v546
        %v601 = vadd.s32 %v577, %v596
        %vm602 = vc.u32 %v577, %v596
        %v603 = vadd.s32 %v599, 1
        %v604 = vsel %vm602, %v603, %v599
        %v605 = vadd.s32 %v600, %v604
        %v606 = vadd.s32 %v605, 536870912
        %v607 = vshrl.u32 %v606, 30
        %v608 = vshll.u32 %v607, 30
        %v609 = vsub.s32 %v605, %v608
        %vm610 = vcmp.lt.s32.totalorder %v609, 0
        %v611 = vsub.s32 0, %v609
        %v612 = vsel %vm610, %v611, %v609
        %v613 = vclz %v612
        %v614 = vsub.s32 %v613, 2
        %vm615 = vcmp.gt.s32.totalorder 0, %v614
        %v616 = vsel %vm615, 0, %v614
        %v617 = vsub.s32 32, %v616
        %v618 = vshll.u32 %v609, %v616
        %v619 = vshrl.u32 %v601, %v617
        %v620 = vor.u32 %v618, %v619
        %v621 = vsub.s32 4294967266, %v616
        %v622 = vadd.s32 %v621, 127
        %v623 = vshll.u32 %v622, 23
        %v624 = vor.u32 4788187, %v623
        %v625 = vand.u32 2147483647, %v624
        %v627 = vcvt.s32.f32 %v620
        %v628 = vmul.f32 %v627, %v625
        %v629 = vxor.u32 %v628, 2147483648
        %v630 = vsel %vm509, %v629, %v628
        %v631 = vsub.s32 4, %v607
        %v632 = vsel %vm509, %v631, %v607
        %v633 = vsel %vm508, %v197, %v630
        %v634 = vsel %vm508, 0, %v632
        %v635 = vmul.f32 %v633, %v633
        %v636 = vmul.f32 %v635, -0.001358992
        %v637 = vadd.f32 %v636, 0.041655596
        %v638 = vmul.f32 %v635, %v637
        %v639 = vadd.f32 %v638, -0.4999988
        %v640 = vmul.f32 %v635, %v639
        %v641 = vadd.f32 1.0, %v640
        %v642 = vmul.f32 %v633, %v633
        %v643 = vmul.f32 %v642, -0.00019511016
        %v644 = vadd.f32 %v643, 0.008332121
        %v645 = vmul.f32 %v642, %v644
        %v646 = vadd.f32 %v645, -0.16666654
        %v647 = vmul.f32 %v642, %v646
        %v648 = vadd.f32 %v647, 1.0
        %v649 = vmul.f32 %v648, %v633
        %vm650 = vweird.f32 %v197
        %v651 = vadd.s32 %v634, 3
        %v652 = vand.u32 %v651, 3
        %vm653 = vcmp.lt.s32.totalorder %v652, 2
        %vm654 = vcmp.eq.s32.totalorder %v652, 0
        %v655 = vxor.u32 %v649, 2147483648
        %v656 = vsel %vm654, %v641, %v655
        %vm657 = vcmp.eq.s32.totalorder %v652, 2
        %v658 = vxor.u32 %v641, 2147483648
        %v659 = vsel %vm657, %v658, %v649
        %v660 = vsel %vm653, %v656, %v659
        %v661 = vsel %vm650, nan, %v660
        %v662 = vand.u32 2147483647, %v198
        %vm663 = vcmp.le.f32.partialorder %v662, 0.7853982
        %vm664 = vcmp.lt.s32.totalorder %v198, 0
        %v665 = vand.u32 %v198, 2139095040
        %v666 = vshrl.u32 %v665, 23
        %v667 = vsub.s32 %v666, 127
        %v668 = vand.u32 2147483647, %v198
        %v669 = vand.u32 %v668, 8388607
        %v670 = vor.u32 %v669, 8388608
        %v671 = vsub.s32 0, %v670
        %v672 = vadd.s32 %v667, 1
        %vm673 = vcmp.gt.s32.totalorder %v672, 0
        %v674 = vsel %vm673, %v672, 0
        %v675 = vshrl.u32 %v674, 5
        %v676 = vand.u32 %v674, 31
        %v677 = vsub.s32 32, %v676
        %v678 = vshrl.u32 683565275, %v677
        %v679 = vshll.u32 683565275, %v676
        %v680 = vshrl.u32 2475754826, %v677
        %v681 = vor.u32 %v679, %v680
        %v682 = vshll.u32 2475754826, %v676
        %v683 = vshrl.u32 2131351028, %v677
        %v684 = vor.u32 %v682, %v683
        %v685 = vshll.u32 2131351028, %v676
        %v686 = vshrl.u32 2102212464, %v677
        %v687 = vor.u32 %v685, %v686
        %v688 = vshll.u32 2102212464, %v676
        %v689 = vshrl.u32 920167782, %v677
        %v690 = vor.u32 %v688, %v689
        %v691 = vshll.u32 920167782, %v676
        %v692 = vshrl.u32 1326507024, %v677
        %v693 = vor.u32 %v691, %v692
        %vm694 = vcmp.lt.s32.totalorder %v675, 1
        %vm695 = vcmp.lt.s32.totalorder %v675, 2
        %vm696 = vcmp.lt.s32.totalorder %v675, 3
        %vm697 = vcmp.lt.s32.totalorder %v675, 4
        %v698 = vsel %vm694, %v678, %v681
        %v699 = vsel %vm697, %v687, 2102212464
        %v700 = vsel %vm696, %v684, %v699
        %v701 = vsel %vm695, %v698, %v700
        %v702 = vsel %vm694, %v681, %v684
        %v703 = vsel %vm697, %v690, 920167782
        %v704 = vsel %vm696, %v687, %v703
        %v705 = vsel %vm695, %v702, %v704
        %v706 = vsel %vm694, %v684, %v687
        %v707 = vsel %vm697, %v693, 1326507024
        %v708 = vsel %vm696, %v690, %v707
        %v709 = vsel %vm695, %v706, %v708
        %v710 = vshll.u32 %v670, 8
        %v711 = vand.u32 %v710, 65535
        %v712 = vshrl.u32 %v710, 16
        %v713 = vand.u32 %v709, 65535
        %v714 = vshrl.u32 %v709, 16
        %v715 = vmul.u32 %v711, %v713
        %v716 = vmul.u32 %v711, %v714
        %v717 = vmul.u32 %v712, %v713
        %v718 = vmul.u32 %v712, %v714
        %v719 = vshll.u32 %v716, 16
        %v720 = vshrl.u32 %v716, 16
        %v721 = vshll.u32 %v717, 16
        %v722 = vshrl.u32 %v717, 16
        %vm723 = vc.u32 %v715, %v719
        %v724 = vsel %vm723, 1, 0
        %v725 = vadd.s32 %v715, %v719
        %v726 = vadd.s32 %v718, %v724
        %vm727 = vc.u32 %v725, %v721
        %v728 = vsel %vm727, 1, 0
        %v729 = vadd.s32 %v725, %v721
        %v730 = vadd.s32 %v726, %v728
        %v731 = vadd.s32 %v730, %v720
        %v732 = vadd.s32 %v731, %v722
        %v733 = vand.u32 %v710, 65535
        %v734 = vshrl.u32 %v710, 16
        %v735 = vand.u32 %v705, 65535
        %v736 = vshrl.u32 %v705, 16
        %v737 = vmul.u32 %v733, %v735
        %v738 = vmul.u32 %v733, %v736
        %v739 = vmul.u32 %v734, %v735
        %v740 = vmul.u32 %v734, %v736
        %v741 = vshll.u32 %v738, 16
        %v742 = vshrl.u32 %v738, 16
        %v743 = vshll.u32 %v739, 16
        %v744 = vshrl.u32 %v739, 16
        %vm745 = vc.u32 %v737, %v741
        %v746 = vsel %vm745, 1, 0
        %v747 = vadd.s32 %v737, %v741
        %v748 = vadd.s32 %v740, %v746
        %vm749 = vc.u32 %v747, %v743
        %v750 = vsel %vm749, 1, 0
        %v751 = vadd.s32 %v747, %v743
        %v752 = vadd.s32 %v748, %v750
        %v753 = vadd.s32 %v752, %v742
        %v754 = vadd.s32 %v753, %v744
        %v755 = vmul.u32 %v710, %v701
        %v756 = vadd.s32 %v732, %v751
        %vm757 = vc.u32 %v732, %v751
        %v758 = vadd.s32 %v754, 1
        %v759 = vsel %vm757, %v758, %v754
        %v760 = vadd.s32 %v755, %v759
        %v761 = vadd.s32 %v760, 536870912
        %v762 = vshrl.u32 %v761, 30
        %v763 = vshll.u32 %v762, 30
        %v764 = vsub.s32 %v760, %v763
        %vm765 = vcmp.lt.s32.totalorder %v764, 0
        %v766 = vsub.s32 0, %v764
        %v767 = vsel %vm765, %v766, %v764
        %v768 = vclz %v767
        %v769 = vsub.s32 %v768, 2
        %vm770 = vcmp.gt.s32.totalorder 0, %v769
        %v771 = vsel %vm770, 0, %v769
        %v772 = vsub.s32 32, %v771
        %v773 = vshll.u32 %v764, %v771
        %v774 = vshrl.u32 %v756, %v772
        %v775 = vor.u32 %v773, %v774
        %v776 = vsub.s32 4294967266, %v771
        %v777 = vadd.s32 %v776, 127
        %v778 = vshll.u32 %v777, 23
        %v779 = vor.u32 4788187, %v778
        %v780 = vand.u32 2147483647, %v779
        %v782 = vcvt.s32.f32 %v775
        %v783 = vmul.f32 %v782, %v780
        %v784 = vxor.u32 %v783, 2147483648
        %v785 = vsel %vm664, %v784, %v783
        %v786 = vsub.s32 4, %v762
        %v787 = vsel %vm664, %v786, %v762
        %v788 = vsel %vm663, %v198, %v785
        %v789 = vsel %vm663, 0, %v787
        %v790 = vmul.f32 %v788, %v788
        %v791 = vmul.f32 %v790, -0.001358992
        %v792 = vadd.f32 %v791, 0.041655596
        %v793 = vmul.f32 %v790, %v792
        %v794 = vadd.f32 %v793, -0.4999988
        %v795 = vmul.f32 %v790, %v794
        %v796 = vadd.f32 1.0, %v795
        %v797 = vmul.f32 %v788, %v788
        %v798 = vmul.f32 %v797, -0.00019511016
        %v799 = vadd.f32 %v798, 0.008332121
        %v800 = vmul.f32 %v797, %v799
        %v801 = vadd.f32 %v800, -0.16666654
        %v802 = vmul.f32 %v797, %v801
        %v803 = vadd.f32 %v802, 1.0
        %v804 = vmul.f32 %v803, %v788
        %vm805 = vweird.f32 %v198
        %v806 = vadd.s32 %v789, 3
        %v807 = vand.u32 %v806, 3
        %vm808 = vcmp.lt.s32.totalorder %v807, 2
        %vm809 = vcmp.eq.s32.totalorder %v807, 0
        %v810 = vxor.u32 %v804, 2147483648
        %v811 = vsel %vm809, %v796, %v810
        %vm812 = vcmp.eq.s32.totalorder %v807, 2
        %v813 = vxor.u32 %v796, 2147483648
        %v814 = vsel %vm812, %v813, %v804
        %v815 = vsel %vm808, %v811, %v814
        %v816 = vsel %vm805, nan, %v815
        %v817 = vmul.f32 %v352, 2.0
        %v818 = vmul.f32 %v506, 2.0
        %v819 = vmul.f32 %v817, %v352
        %v820 = vmul.f32 %v818, %v506
        %v821 = vsub.f32 %v819, 1.0
        %v822 = vsub.f32 %v820, 1.0
        %v823 = vmul.f32 %v817, %v661
        %v824 = vmul.f32 %v818, %v816
        %v825 = vmul.f32 %v817, %v821
        %v826 = vmul.f32 %v818, %v822
        %v827 = vsub.f32 %v825, %v352
        %v828 = vsub.f32 %v826, %v506
        %v829 = vmul.f32 %v817, %v823
        %v830 = vmul.f32 %v818, %v824
        %v831 = vsub.f32 %v829, %v661
        %v832 = vsub.f32 %v830, %v816
        %v833 = vld [vmem:[#allocation5] sm:$0xff]
        %vm834 = vcmask 392192
        %v836 = vsel %vm834, %v833, 0
        %838 = vmatpush.msra.mxu0 0.0
        %839 = vmatpush.msra.mxu0 0.0
        %840 = vmatpush.msra.mxu0 0.0
        %841 = vmatpush.msra.mxu0 0.0
        %842 = vmatpush.msra.mxu0 0.0
        %843 = vmatpush.msra.mxu0 0.0
        %844 = vmatpush.msra.mxu0 0.0
        %845 = vmatpush.msra.mxu0 0.0
        %846 = vmatpush.msra.mxu0 0.0
        %847 = vmatpush.msra.mxu0 0.0
        %848 = vmatpush.msra.mxu0 %v831
        %849 = vmatpush.msra.mxu0 %v823
        %850 = vmatpush.msra.mxu0 %v661
        %851 = vmatpush.msra.mxu0 %v827
        %852 = vmatpush.msra.mxu0 %v821
        %853 = vmatpush.msra.mxu0 %v352
        %854 = vmatmul.f32.gmra.mxu0 %v836
        %v855 = vpop.f32.mrf.mxu0
        %v856 = vadd.f32 0.0, %v855
        %857 = vdwg.mxu0
        %858 = vmatpush.msra.mxu0 0.0
        %859 = vmatpush.msra.mxu0 0.0
        %860 = vmatpush.msra.mxu0 0.0
        %861 = vmatpush.msra.mxu0 0.0
        %862 = vmatpush.msra.mxu0 0.0
        %863 = vmatpush.msra.mxu0 0.0
        %864 = vmatpush.msra.mxu0 0.0
        %865 = vmatpush.msra.mxu0 0.0
        %866 = vmatpush.msra.mxu0 0.0
        %867 = vmatpush.msra.mxu0 0.0
        %868 = vmatpush.msra.mxu0 %v832
        %869 = vmatpush.msra.mxu0 %v824
        %870 = vmatpush.msra.mxu0 %v816
        %871 = vmatpush.msra.mxu0 %v828
        %872 = vmatpush.msra.mxu0 %v822
        %873 = vmatpush.msra.mxu0 %v506
        %874 = vmatmul.f32.gmra.mxu0 %v836
        %v875 = vpop.f32.mrf.mxu0
        %v876 = vadd.f32 0.0, %v875
        %877 = vdwg.mxu0
        %878 = vst [vmem:[%s194] sm:$0xff] %v856
        %879 = vst [vmem:[%s194 + $0x8] sm:$0xff] %v876
        %s880 = sand.u32 %s91, 1
        %s881 = scalar_lea.sflag [#allocation4], %s880
        %s882 = sand.u32 %s91, 1
        %s883 = smul.addr %s882, 16
        %s884 = scalar_lea.vmem [#allocation7], %s883
        // Predicated region
        $region37: #{tpu_custom_call.1} parent=27 // pred_check
          %p885 = pneg %p101
        $region38: #{tpu_custom_call.1} parent=27 // pred_check_branch
          %887 = sbr.rel (%p885) target = $region40
        $region39: #{tpu_custom_call.1} parent=27 // pred_region
          %s888 = smul.u32 2, %s25
          %890 = vsyncadd %s881, 0
          %s891 = smul.addr %s24, 2
          %s892 = sadd.s32 %s888, %s891
          %s893 = smul.addr %s892, 8
          %s894 = scalar_lea.hbm %s2, %s893
          %s896 = sshll.u32 %s884, 4
          %s897 = int_to_ptr.vmem [resolvable:$true] %s896
          %s898 = sshll.u32 %s894, 4
          %s899 = int_to_ptr.hbm [resolvable:$true] %s898
          %901 = dma.vmem_to_hbm [thread:$0]  %s897, 256, %s899, %s881
        $region40: #{tpu_custom_call.1} parent=27 // pred_fallthru
          _
      $region28: #{tpu_custom_call.1} parent=5 // pred_fallthru
        _
      %p902 = scmp.le.s32.totalorder 2, %s15
      // Predicated region
      $region41: #{tpu_custom_call.1} parent=5 // pred_check
        %p903 = pneg %p902
      $region42: #{tpu_custom_call.1} parent=5 // pred_check_branch
        %905 = sbr.rel (%p903) target = $region44
      $region43: #{tpu_custom_call.1} parent=5 // pred_region
        %s906 = ssub.s32 %s15, 2
        // Predicated region
        $region45: #{tpu_custom_call.1} parent=43 // pred_check
          %p907 = pneg %p107
        $region46: #{tpu_custom_call.1} parent=43 // pred_check_branch
          %909 = sbr.rel (%p907) target = $region48
        $region47: #{tpu_custom_call.1} parent=43 // pred_region
          %s910 = sand.u32 %s92, 1
          %s911 = scalar_lea.sflag [#allocation4], %s910
          %s912 = sand.u32 %s92, 1
          %s913 = smul.addr %s912, 16
          %s914 = scalar_lea.vmem [#allocation7], %s913
          %916 = dma.done %s911, 256
        $region48: #{tpu_custom_call.1} parent=43 // pred_fallthru
          _
      $region44: #{tpu_custom_call.1} parent=5 // pred_fallthru
        _
    $region6: #{tpu_custom_call.1} parent=1 // loop_footer
      %s19 = sadd.s32 1, %s15
    $region7: #{tpu_custom_call.1} parent=1 // loop_footer_branch
      %14 = sbr.rel target = $region3
    $region8: #{tpu_custom_call.1} parent=1 // loop_exit
      _
    %917 = vsyncpa [#allocation3], 1
    %s918 = scalar_lea.sflag [#allocation3], 1
    %919 = vsyncpa %s918, 1
    %920 = vsyncpa [#allocation6], 1
    %921 = vsyncpa [#allocation4], 1
    %s922 = scalar_lea.sflag [#allocation4], 1
    %923 = vsyncpa %s922, 1

</llo_original>
